<compile_context>
chip_gen: v7x
topology: tpu7x:2x2x1
jax: 0.10.0
libtpu: 0.0.40
codegen_flags: <defaults>
</compile_context>

<pallas_src>
import functools

import jax
import jax.numpy as jnp
from jax import lax
from jax.experimental import pallas as pl
from jax.experimental.pallas import tpu as pltpu

HIDDEN = 128


def _round_up(x, m):
    return ((x + m - 1) // m) * m


def _cdiv(a, b):
    return -(-a // b)


def actor_kernel(x_ref, w1_ref, b1_ref, wh_ref, bh_ref, out_ref, *,
                 action_dim, compute_dtype):
    # Hidden layer: [TB, S] @ [S, H] -> [TB, H], ReLU (f32 accumulate).
    x = x_ref[...].astype(compute_dtype)
    w1 = w1_ref[...].astype(compute_dtype)
    h = jnp.dot(x, w1, preferred_element_type=jnp.float32)
    h = jnp.maximum(h + b1_ref[...], 0.0)

    # Fused heads: [TB, H] @ [H, 2A] -> [TB, 2A]
    #   columns [0:A)   -> mean     (unclipped)
    #   columns [A:2A)  -> log_std  (clip to [-20, 2])
    wh = wh_ref[...].astype(compute_dtype)
    out = jnp.dot(h.astype(compute_dtype), wh,
                  preferred_element_type=jnp.float32) + bh_ref[...]

    col = lax.broadcasted_iota(jnp.int32, out.shape, 1)
    out_ref[...] = jnp.where(col >= action_dim,
                             jnp.clip(out, -20.0, 2.0), out)


def actor_forward(state, params, *, batch_tile=4096,
                  compute_dtype=jnp.float32):
    """state: [B, state_dim] float32. params: dict from init_actor_params.

    Returns (mean, log_std), each [B, action_dim] float32.
    """
    B, S = state.shape
    A = params["action_dim"]
    H = params["w1"].shape[1]
    P = params["w_heads"].shape[1]  # = 2*A (unpadded head output width)

    # --- adaptive batch tiling -------------------------------------------
    tb_max = max(8, _round_up(int(batch_tile), 8))
    n_tiles = _cdiv(B, tb_max)
    if B >= 512:
        # Guarantee >=2 grid steps so "parallel" shards across v7x's 2 TCs.
        n_tiles = max(n_tiles, 2)
    TB = _round_up(_cdiv(B, n_tiles), 8)   # bounded padding: <8 rows/tile
    Bp = n_tiles * TB
    if Bp != B:
        state = jnp.pad(state, ((0, Bp - B), (0, 0)))

    kernel = functools.partial(actor_kernel, action_dim=A,
                               compute_dtype=compute_dtype)

    out = pl.pallas_call(
        kernel,
        out_shape=jax.ShapeDtypeStruct((Bp, P), jnp.float32),
        grid=(n_tiles,),
        in_specs=[
            pl.BlockSpec((TB, S), lambda i: (i, 0)),   # state tile
            pl.BlockSpec((S, H), lambda i: (0, 0)),    # W1 (resident)
            pl.BlockSpec((1, H), lambda i: (0, 0)),    # b1
            pl.BlockSpec((H, P), lambda i: (0, 0)),    # fused head weights
            pl.BlockSpec((1, P), lambda i: (0, 0)),    # fused head bias
        ],
        out_specs=pl.BlockSpec((TB, P), lambda i: (i, 0)),
        compiler_params=pltpu.CompilerParams(
            dimension_semantics=("parallel",)),
    )(state, params["w1"], params["b1"], params["w_heads"], params["b_heads"])

    mean = out[:B, :A]
    log_std = out[:B, A:2 * A]
    return mean, log_std


def init_actor_params(key, state_dim, action_dim):
    """Deterministic init mimicking nn.Linear's U(-1/sqrt(fan_in), 1/sqrt(fan_in)).

    Weights stored [in, out] (transposed vs. PyTorch); biases stored [1, out].
    The mean/log_std heads are fused column-wise into a single [HIDDEN, 2A]
    weight / [1, 2A] bias for the kernel; unfused copies are kept for the
    pure-JAX reference.
    """
    k1, k2, k3, k4, k5, k6 = jax.random.split(key, 6)

    def lin(kw, kb, fan_in, fan_out):
        bound = 1.0 / jnp.sqrt(jnp.float32(fan_in))
        w = jax.random.uniform(kw, (fan_in, fan_out), jnp.float32, -bound, bound)
        b = jax.random.uniform(kb, (1, fan_out), jnp.float32, -bound, bound)
        return w, b

    w1, b1 = lin(k1, k2, state_dim, HIDDEN)
    wm, bm = lin(k3, k4, HIDDEN, action_dim)
    ws, bs = lin(k5, k6, HIDDEN, action_dim)

    w_heads = jnp.concatenate([wm, ws], axis=1)   # [HIDDEN, 2A]
    b_heads = jnp.concatenate([bm, bs], axis=1)   # [1, 2A]

    return {
        "action_dim": action_dim,
        "w1": w1, "b1": b1,
        "w_heads": w_heads, "b_heads": b_heads,
        # unfused copies, only used by the reference implementation
        "wm": wm, "bm": bm, "ws": ws, "bs": bs,
    }


def actor_forward_ref(state, params):
    """Pure-JAX reference (unfused weights) for correctness checking."""
    h = jnp.maximum(state @ params["w1"] + params["b1"], 0.0)
    mean = h @ params["wm"] + params["bm"]
    log_std = jnp.clip(h @ params["ws"] + params["bs"], -20.0, 2.0)
    return mean, log_std


if __name__ == "__main__":
    B, STATE_DIM, ACTION_DIM = 8, 16, 4

    key = jax.random.PRNGKey(0)
    k_params, k_state = jax.random.split(key)

    params = init_actor_params(k_params, STATE_DIM, ACTION_DIM)
    state = jax.random.normal(k_state, (B, STATE_DIM), jnp.float32)

    mean, log_std = actor_forward(state, params)
    jax.block_until_ready((mean, log_std))

    ref_mean, ref_log_std = actor_forward_ref(state, params)
    assert mean.shape == (B, ACTION_DIM) and log_std.shape == (B, ACTION_DIM)
    assert jnp.allclose(mean, ref_mean, atol=1e-5, rtol=1e-5)
    assert jnp.allclose(log_std, ref_log_std, atol=1e-5, rtol=1e-5)
    assert bool(jnp.all(log_std <= 2.0)) and bool(jnp.all(log_std >= -20.0))

    # Exercise the gridded (large-batch, >=2 tiles, non-tile-multiple) path.
    big_state = jax.random.normal(jax.random.PRNGKey(1), (1030, STATE_DIM), jnp.float32)
    bm_, bl_ = actor_forward(big_state, params)
    jax.block_until_ready((bm_, bl_))
    rbm_, rbl_ = actor_forward_ref(big_state, params)
    assert jnp.allclose(bm_, rbm_, atol=1e-5, rtol=1e-5)
    assert jnp.allclose(bl_, rbl_, atol=1e-5, rtol=1e-5)

    # Exercise a small user-supplied (non-multiple-of-8) batch_tile for robustness.
    sm_, sl_ = actor_forward(big_state, params, batch_tile=300)
    jax.block_until_ready((sm_, sl_))
    assert jnp.allclose(sm_, rbm_, atol=1e-5, rtol=1e-5)
    assert jnp.allclose(sl_, rbl_, atol=1e-5, rtol=1e-5)

    print("KERNEL_OK")
</pallas_src>

<mosaic_0001>
module attributes {stable_mosaic.version = 11 : i64} {
  func.func @actor_kernel(%arg0: i32, %arg1: memref<8x16xf32, #tpu.memory_space<vmem>>, %arg2: memref<16x128xf32, #tpu.memory_space<vmem>>, %arg3: memref<1x128xf32, #tpu.memory_space<vmem>>, %arg4: memref<128x8xf32, #tpu.memory_space<vmem>>, %arg5: memref<1x8xf32, #tpu.memory_space<vmem>>, %arg6: memref<8x8xf32, #tpu.memory_space<vmem>>) attributes {dimension_semantics = [#tpu.dimension_semantics<parallel>], iteration_bounds = array<i64: 1>, scalar_prefetch = 0 : i64, scratch_operands = 0 : i64, tpu.core_type = #tpu.core_type<tc>, window_params = [{transform_indices = @transform_0, window_bounds = array<i64: 8, 16>}, {pipeline_mode = #tpu.pipeline_mode<synchronous>, transform_indices = @transform_1, window_bounds = array<i64: 16, 128>}, {pipeline_mode = #tpu.pipeline_mode<synchronous>, transform_indices = @transform_2, window_bounds = array<i64: 1, 128>}, {pipeline_mode = #tpu.pipeline_mode<synchronous>, transform_indices = @transform_3, window_bounds = array<i64: 128, 8>}, {pipeline_mode = #tpu.pipeline_mode<synchronous>, transform_indices = @transform_4, window_bounds = array<i64: 1, 8>}, {transform_indices = @transform_5, window_bounds = array<i64: 8, 8>}]} {
    %c0 = arith.constant 0 : index
    %c0_0 = arith.constant 0 : index
    %0 = vector.load %arg1[%c0, %c0_0] : memref<8x16xf32, #tpu.memory_space<vmem>>, vector<8x16xf32>
    %c0_1 = arith.constant 0 : index
    %c0_2 = arith.constant 0 : index
    %1 = vector.load %arg2[%c0_1, %c0_2] : memref<16x128xf32, #tpu.memory_space<vmem>>, vector<16x128xf32>
    %cst = arith.constant dense<0.000000e+00> : vector<8x128xf32>
    %2 = tpu.matmul %0, %1, %cst {dimension_numbers = #tpu.dot_dimension_numbers<[1], [0], [0], [1], [0, 0, 1, 1], [], []>} : vector<8x16xf32>, vector<16x128xf32>, vector<8x128xf32> -> vector<8x128xf32>
    %c0_3 = arith.constant 0 : index
    %c0_4 = arith.constant 0 : index
    %3 = vector.load %arg3[%c0_3, %c0_4] : memref<1x128xf32, #tpu.memory_space<vmem>>, vector<1x128xf32>
    %4 = vector.broadcast %3 : vector<1x128xf32> to vector<8x128xf32>
    %5 = arith.addf %2, %4 : vector<8x128xf32>
    %cst_5 = arith.constant 0.000000e+00 : f32
    %6 = vector.broadcast %cst_5 : f32 to vector<8x128xf32>
    %7 = arith.maximumf %5, %6 : vector<8x128xf32>
    %c0_6 = arith.constant 0 : index
    %c0_7 = arith.constant 0 : index
    %8 = vector.load %arg4[%c0_6, %c0_7] : memref<128x8xf32, #tpu.memory_space<vmem>>, vector<128x8xf32>
    %cst_8 = arith.constant dense<0.000000e+00> : vector<8x8xf32>
    %9 = tpu.matmul %7, %8, %cst_8 {dimension_numbers = #tpu.dot_dimension_numbers<[1], [0], [0], [1], [0, 0, 1, 1], [], []>} : vector<8x128xf32>, vector<128x8xf32>, vector<8x8xf32> -> vector<8x8xf32>
    %c0_9 = arith.constant 0 : index
    %c0_10 = arith.constant 0 : index
    %10 = vector.load %arg5[%c0_9, %c0_10] : memref<1x8xf32, #tpu.memory_space<vmem>>, vector<1x8xf32>
    %11 = vector.broadcast %10 : vector<1x8xf32> to vector<8x8xf32>
    %12 = arith.addf %9, %11 : vector<8x8xf32>
    %13 = tpu.iota {dimensions = array<i32: 1>} : vector<8x8xi32>
    %c4_i32 = arith.constant 4 : i32
    %14 = vector.broadcast %c4_i32 : i32 to vector<8x8xi32>
    %15 = arith.cmpi sge, %13, %14 : vector<8x8xi32>
    %cst_11 = arith.constant -2.000000e+01 : f32
    %cst_12 = arith.constant 2.000000e+00 : f32
    %16 = vector.broadcast %cst_11 : f32 to vector<8x8xf32>
    %17 = arith.maximumf %16, %12 : vector<8x8xf32>
    %18 = vector.broadcast %cst_12 : f32 to vector<8x8xf32>
    %19 = arith.minimumf %18, %17 : vector<8x8xf32>
    %20 = arith.select %15, %19, %12 : vector<8x8xi1>, vector<8x8xf32>
    %c0_13 = arith.constant 0 : index
    %c0_14 = arith.constant 0 : index
    %21 = vector.load %arg6[%c0_13, %c0_14] : memref<8x8xf32, #tpu.memory_space<vmem>>, vector<8x8xf32>
    tpu.vector_store %arg6[%c0_13, %c0_14], %20 {strides = array<i32>} : memref<8x8xf32, #tpu.memory_space<vmem>>, vector<8x8xf32>,
    return
  }
  func.func @transform_0(%arg0: i32) -> (i32, i32) {
    %c0_i32 = arith.constant 0 : i32
    %c0_i32_0 = arith.constant 0 : i32
    return %arg0, %c0_i32 : i32, i32
  }
  func.func @transform_1(%arg0: i32) -> (i32, i32) {
    %c0_i32 = arith.constant 0 : i32
    %c0_i32_0 = arith.constant 0 : i32
    %c0_i32_1 = arith.constant 0 : i32
    return %c0_i32, %c0_i32_0 : i32, i32
  }
  func.func @transform_2(%arg0: i32) -> (i32, i32) {
    %c0_i32 = arith.constant 0 : i32
    %c0_i32_0 = arith.constant 0 : i32
    %c0_i32_1 = arith.constant 0 : i32
    return %c0_i32, %c0_i32_0 : i32, i32
  }
  func.func @transform_3(%arg0: i32) -> (i32, i32) {
    %c0_i32 = arith.constant 0 : i32
    %c0_i32_0 = arith.constant 0 : i32
    %c0_i32_1 = arith.constant 0 : i32
    return %c0_i32, %c0_i32_0 : i32, i32
  }
  func.func @transform_4(%arg0: i32) -> (i32, i32) {
    %c0_i32 = arith.constant 0 : i32
    %c0_i32_0 = arith.constant 0 : i32
    %c0_i32_1 = arith.constant 0 : i32
    return %c0_i32, %c0_i32_0 : i32, i32
  }
  func.func @transform_5(%arg0: i32) -> (i32, i32) {
    %c0_i32 = arith.constant 0 : i32
    %c0_i32_0 = arith.constant 0 : i32
    return %arg0, %c0_i32 : i32, i32
  }
}

</mosaic_0001>

<llo_original>
// kernel: tpu_custom_call.1
$region0: #{tpu_custom_call.1}
  #allocation0 [shape = 'u32[]', space=smem, size = 0x4, offset = 0x4, fixed_abs, tag = 'smem constant byte address 0x4 - core index']
  #allocation1 [shape = 'u32[144,128]{1,0:T(1,128)}', space=vmem, size = 0x12000, scoped, tag = 'internal scratch']
  %s0 = inlined_call_operand.vmem [shape: f32[8,16], index: 0, kind: input, shape index: {}]
  %s1 = inlined_call_operand.vmem [shape: f32[16,128], index: 1, kind: input, shape index: {}]
  %s2 = inlined_call_operand.vmem [shape: f32[1,128], index: 2, kind: input, shape index: {}]
  %s3 = inlined_call_operand.vmem [shape: f32[128,8], index: 3, kind: input, shape index: {}]
  %s4 = inlined_call_operand.vmem [shape: f32[1,8], index: 4, kind: input, shape index: {}]
  %s5 = inlined_call_operand.hbm [shape: f32[8,8], index: 5, kind: output, shape index: {}]
  %s6 = sld [smem:[#allocation0]]
  $region30: #{tpu_custom_call.1} parent=0
    _
  %s8 = ssub.s32 1, %s6
  %s9 = scalar_select 0, %s8, %s6
  $region1: #{tpu_custom_call.1} parent=0
    #allocation2 [shape = 'u8[4096]{0}', space=vmem, size = 0x1000, scoped, tag = 'output window, operand 0, single buffered']
    #allocation3 [shape = 's32[1]{0}', space=sflag, size = 0x4, scoped, tag = 'scoped memory for tpu_custom_call.1']
    %10 = vsyncpa [#allocation3], 0
    // Predicated region
    $region2: #{tpu_custom_call.1} parent=1 // pred_check
      _
    $region3: #{tpu_custom_call.1} parent=1 // pred_check_branch
      %12 = sbr.rel (0) target = $region5
    $region4: #{tpu_custom_call.1} parent=1 // pred_region
      _
    $region5: #{tpu_custom_call.1} parent=1 // pred_fallthru
      _
    // Predicated region
    $region6: #{tpu_custom_call.1} parent=1 // pred_check
      _
    $region7: #{tpu_custom_call.1} parent=1 // pred_check_branch
      %14 = sbr.rel (0) target = $region9
    $region8: #{tpu_custom_call.1} parent=1 // pred_region
      _
    $region9: #{tpu_custom_call.1} parent=1 // pred_fallthru
      _
    // Predicated region
    $region10: #{tpu_custom_call.1} parent=1 // pred_check
      _
    $region11: #{tpu_custom_call.1} parent=1 // pred_check_branch
      %16 = sbr.rel (0) target = $region13
    $region12: #{tpu_custom_call.1} parent=1 // pred_region
      _
    $region13: #{tpu_custom_call.1} parent=1 // pred_fallthru
      _
    // Predicated region
    $region14: #{tpu_custom_call.1} parent=1 // pred_check
      _
    $region15: #{tpu_custom_call.1} parent=1 // pred_check_branch
      %18 = sbr.rel (0) target = $region17
    $region16: #{tpu_custom_call.1} parent=1 // pred_region
      _
    $region17: #{tpu_custom_call.1} parent=1 // pred_fallthru
      _
    // Predicated region
    $region18: #{tpu_custom_call.1} parent=1 // pred_check
      _
    $region19: #{tpu_custom_call.1} parent=1 // pred_check_branch
      %20 = sbr.rel (0) target = $region21
    $region20: #{tpu_custom_call.1} parent=1 // pred_region
      _
    $region21: #{tpu_custom_call.1} parent=1 // pred_fallthru
      _
    %v21 = vld [vmem:[%s0] sm:$0xff]
    %v22 = vld [vmem:[%s1] sm:$0xff]
    %v23 = vld [vmem:[%s1 + $0x8] sm:$0xff]
    %v24 = vld [vmem:[%s2] sm:$0x1]
    %v26 = vlaneseq
    %v27 = vshrl.u32 %v26, 7
    %v28 = vsub.s32 0, %v27
    %v29 = vrot.slane %v24, %v28
    %vm31 = vcmask 130048
    %v33 = vsel %vm31, %v21, 0
    %35 = vmatprep.subr.mxu0 0.0
    %36 = vmatpush1.msra.mxu0 %v22
    %37 = vmatprep.subr.mxu0 0.0
    %38 = vmatpush1.msra.mxu0 %v23
    %39 = vmatprep.subr.mxu0 0.0
    %40 = vmatpush1.msra.mxu0 0.0
    %41 = vmatprep.subr.mxu0 0.0
    %42 = vmatpush1.msra.mxu0 0.0
    %43 = vmatprep.subr.mxu0 0.0
    %44 = vmatpush1.msra.mxu0 0.0
    %45 = vmatprep.subr.mxu0 0.0
    %46 = vmatpush1.msra.mxu0 0.0
    %47 = vmatprep.subr.mxu0 0.0
    %48 = vmatpush1.msra.mxu0 0.0
    %49 = vmatprep.subr.mxu0 0.0
    %50 = vmatpush1.msra.mxu0 0.0
    %51 = vmatprep.subr.mxu0 0.0
    %52 = vmatpush1.msra.mxu0 0.0
    %53 = vmatprep.subr.mxu0 0.0
    %54 = vmatpush1.msra.mxu0 0.0
    %55 = vmatprep.subr.mxu0 0.0
    %56 = vmatpush1.msra.mxu0 0.0
    %57 = vmatprep.subr.mxu0 0.0
    %58 = vmatpush1.msra.mxu0 0.0
    %59 = vmatprep.subr.mxu0 0.0
    %60 = vmatpush1.msra.mxu0 0.0
    %61 = vmatprep.subr.mxu0 0.0
    %62 = vmatpush1.msra.mxu0 0.0
    %63 = vmatprep.subr.mxu0 0.0
    %64 = vmatpush1.msra.mxu0 0.0
    %65 = vmatprep.subr.mxu0 0.0
    %66 = vmatpush1.msra.mxu0 0.0
    %67 = vmatprep.subr.mxu0 0.0
    %68 = vmatpush1.msra.mxu0 0.0
    %69 = vmatprep.subr.mxu0 0.0
    %70 = vmatpush1.msra.mxu0 0.0
    %71 = vmatprep.subr.mxu0 0.0
    %72 = vmatpush1.msra.mxu0 0.0
    %73 = vmatprep.subr.mxu0 0.0
    %74 = vmatpush1.msra.mxu0 0.0
    %75 = vmatprep.subr.mxu0 0.0
    %76 = vmatpush1.msra.mxu0 0.0
    %77 = vmatprep.subr.mxu0 0.0
    %78 = vmatpush1.msra.mxu0 0.0
    %79 = vmatprep.subr.mxu0 0.0
    %80 = vmatpush1.msra.mxu0 0.0
    %81 = vmatprep.subr.mxu0 0.0
    %82 = vmatpush1.msra.mxu0 0.0
    %83 = vmatprep.subr.mxu0 0.0
    %84 = vmatpush1.msra.mxu0 0.0
    %85 = vmatprep.subr.mxu0 0.0
    %86 = vmatpush1.msra.mxu0 0.0
    %87 = vmatprep.subr.mxu0 0.0
    %88 = vmatpush1.msra.mxu0 0.0
    %89 = vmatprep.subr.mxu0 0.0
    %90 = vmatpush1.msra.mxu0 0.0
    %91 = vmatprep.subr.mxu0 0.0
    %92 = vmatpush1.msra.mxu0 0.0
    %93 = vmatprep.subr.mxu0 0.0
    %94 = vmatpush1.msra.mxu0 0.0
    %95 = vmatprep.subr.mxu0 0.0
    %96 = vmatpush1.msra.mxu0 0.0
    %97 = vmatprep.subr.mxu0 0.0
    %98 = vmatpush1.msra.mxu0 0.0
    %99 = vmatprep.mubr.f32.mxu0 0.0
    %100 = vmatmul.mubr.f32.gmra.mrb[0].mxu0 %v33
    %v101 = vpop.f32.mrb[0].mxu0
    %v102 = vadd.f32 %v29, %v101
    %v103 = vpop.f32.mrb[0].mxu0
    %104 = vdwg.mxu0
    %v105 = vmax.f32 %v102, 0.0
    %v106 = vld [vmem:[%s3] sm:$0xff]
    %v107 = vld [vmem:[%s3 + $0x8] sm:$0xff]
    %v108 = vld [vmem:[%s3 + $0x10] sm:$0xff]
    %v109 = vld [vmem:[%s3 + $0x18] sm:$0xff]
    %v110 = vld [vmem:[%s3 + $0x20] sm:$0xff]
    %v111 = vld [vmem:[%s3 + $0x28] sm:$0xff]
    %v112 = vld [vmem:[%s3 + $0x30] sm:$0xff]
    %v113 = vld [vmem:[%s3 + $0x38] sm:$0xff]
    %v114 = vld [vmem:[%s3 + $0x40] sm:$0xff]
    %v115 = vld [vmem:[%s3 + $0x48] sm:$0xff]
    %v116 = vld [vmem:[%s3 + $0x50] sm:$0xff]
    %v117 = vld [vmem:[%s3 + $0x58] sm:$0xff]
    %v118 = vld [vmem:[%s3 + $0x60] sm:$0xff]
    %v119 = vld [vmem:[%s3 + $0x68] sm:$0xff]
    %v120 = vld [vmem:[%s3 + $0x70] sm:$0xff]
    %v121 = vld [vmem:[%s3 + $0x78] sm:$0xff]
    %v122 = vld [vmem:[%s4] sm:$0x1]
    %v124 = vlaneseq
    %v125 = vshrl.u32 %v124, 7
    %v126 = vsub.s32 0, %v125
    %v127 = vrot.slane %v122, %v126
    %129 = vmatprep.subr.mxu0 0.0
    %130 = vmatpush1.msra.mxu0 %v106
    %131 = vmatprep.subr.mxu0 0.0
    %132 = vmatpush1.msra.mxu0 %v107
    %133 = vmatprep.subr.mxu0 0.0
    %134 = vmatpush1.msra.mxu0 %v108
    %135 = vmatprep.subr.mxu0 0.0
    %136 = vmatpush1.msra.mxu0 %v109
    %137 = vmatprep.subr.mxu0 0.0
    %138 = vmatpush1.msra.mxu0 %v110
    %139 = vmatprep.subr.mxu0 0.0
    %140 = vmatpush1.msra.mxu0 %v111
    %141 = vmatprep.subr.mxu0 0.0
    %142 = vmatpush1.msra.mxu0 %v112
    %143 = vmatprep.subr.mxu0 0.0
    %144 = vmatpush1.msra.mxu0 %v113
    %145 = vmatprep.subr.mxu0 0.0
    %146 = vmatpush1.msra.mxu0 %v114
    %147 = vmatprep.subr.mxu0 0.0
    %148 = vmatpush1.msra.mxu0 %v115
    %149 = vmatprep.subr.mxu0 0.0
    %150 = vmatpush1.msra.mxu0 %v116
    %151 = vmatprep.subr.mxu0 0.0
    %152 = vmatpush1.msra.mxu0 %v117
    %153 = vmatprep.subr.mxu0 0.0
    %154 = vmatpush1.msra.mxu0 %v118
    %155 = vmatprep.subr.mxu0 0.0
    %156 = vmatpush1.msra.mxu0 %v119
    %157 = vmatprep.subr.mxu0 0.0
    %158 = vmatpush1.msra.mxu0 %v120
    %159 = vmatprep.subr.mxu0 0.0
    %160 = vmatpush1.msra.mxu0 %v121
    %161 = vmatprep.subr.mxu0 0.0
    %162 = vmatpush1.msra.mxu0 0.0
    %163 = vmatprep.subr.mxu0 0.0
    %164 = vmatpush1.msra.mxu0 0.0
    %165 = vmatprep.subr.mxu0 0.0
    %166 = vmatpush1.msra.mxu0 0.0
    %167 = vmatprep.subr.mxu0 0.0
    %168 = vmatpush1.msra.mxu0 0.0
    %169 = vmatprep.subr.mxu0 0.0
    %170 = vmatpush1.msra.mxu0 0.0
    %171 = vmatprep.subr.mxu0 0.0
    %172 = vmatpush1.msra.mxu0 0.0
    %173 = vmatprep.subr.mxu0 0.0
    %174 = vmatpush1.msra.mxu0 0.0
    %175 = vmatprep.subr.mxu0 0.0
    %176 = vmatpush1.msra.mxu0 0.0
    %177 = vmatprep.subr.mxu0 0.0
    %178 = vmatpush1.msra.mxu0 0.0
    %179 = vmatprep.subr.mxu0 0.0
    %180 = vmatpush1.msra.mxu0 0.0
    %181 = vmatprep.subr.mxu0 0.0
    %182 = vmatpush1.msra.mxu0 0.0
    %183 = vmatprep.subr.mxu0 0.0
    %184 = vmatpush1.msra.mxu0 0.0
    %185 = vmatprep.subr.mxu0 0.0
    %186 = vmatpush1.msra.mxu0 0.0
    %187 = vmatprep.subr.mxu0 0.0
    %188 = vmatpush1.msra.mxu0 0.0
    %189 = vmatprep.subr.mxu0 0.0
    %190 = vmatpush1.msra.mxu0 0.0
    %191 = vmatprep.subr.mxu0 0.0
    %192 = vmatpush1.msra.mxu0 0.0
    %193 = vmatprep.mubr.f32.mxu0 0.0
    %194 = vmatmul.mubr.f32.gmra.mrb[0].mxu0 %v105
    %v195 = vpop.f32.mrb[0].mxu0
    %v196 = vadd.f32 %v127, %v195
    %v197 = vpop.f32.mrb[0].mxu0
    %198 = vdwg.mxu0
    %v199 = vlaneseq
    %v200 = vand.u32 %v199, 127
    %vm201 = vcmp.ge.s32.totalorder %v200, 4
    %v202 = vmax.f32 %v196, -20.0
    %v203 = vmin.f32 %v202, 2.0
    %v204 = vsel %vm201, %v203, %v196
    %vm205 = vcmask 64512
    %206 = vst.msk [vmem:[#allocation2] sm:$0xff] %vm205, %v204
    // Predicated region
    $region22: #{tpu_custom_call.1} parent=1 // pred_check
      _
    $region23: #{tpu_custom_call.1} parent=1 // pred_check_branch
      %208 = sbr.rel (0) target = $region25
    $region24: #{tpu_custom_call.1} parent=1 // pred_region
      %s210 = ssub.s32 128, 128
      %211 = vsyncadd [#allocation3], %s210
      %s213 = sshll.u32 [#allocation2], 4
      %s214 = int_to_ptr.vmem [resolvable:$true] %s213
      %216 = dma.vmem_to_hbm [thread:$0]  %s214, 128, %s5, [#allocation3]
    $region25: #{tpu_custom_call.1} parent=1 // pred_fallthru
      _
    // Predicated region
    $region26: #{tpu_custom_call.1} parent=1 // pred_check
      _
    $region27: #{tpu_custom_call.1} parent=1 // pred_check_branch
      %218 = sbr.rel (0) target = $region29
    $region28: #{tpu_custom_call.1} parent=1 // pred_region
      %219 = dma.done [#allocation3], 128
    $region29: #{tpu_custom_call.1} parent=1 // pred_fallthru
      _
    %220 = vsyncpa [#allocation3], 1

</llo_original>
